<compile_context>
chip_gen: v7x
topology: tpu7x:2x2x1
jax: 0.10.0
libtpu: 0.0.40
codegen_flags: <defaults>
</compile_context>

<pallas_src>
import functools

import jax
import jax.numpy as jnp
from jax import lax
from jax.experimental import pallas as pl
from jax.experimental.pallas import tpu as pltpu


# ---------------------------------------------------------------------------
# Hardware / tiling helpers
# ---------------------------------------------------------------------------
def _tpu_vmem_and_cores():
    """(vmem_capacity_bytes, tensorcores_per_chip) with safe fallbacks."""
    vmem = 128 * 2**20
    cores = 0
    try:
        info = pltpu.get_tpu_info()
        vmem = int(getattr(info, "vmem_capacity_bytes", vmem) or vmem)
        cores = int(getattr(info, "num_cores", 0) or 0)
    except Exception:
        pass
    if cores <= 0:
        # v7x exposes ~64 MiB VMEM per TensorCore and has 2 TCs per chip;
        # v5e / v6e expose 128 MiB and have a single TensorCore.
        cores = 2 if vmem <= 80 * 2**20 else 1
    return vmem, cores


def _largest_aligned_divisor(total, align, target):
    """Largest multiple of `align` dividing `total` and <= max(align, target).
    Returns None if no such divisor exists."""
    best = None
    limit = min(total, max(align, target))
    t = align
    while t <= limit:
        if total % t == 0:
            best = t
        t += align
    return best


def _vmem_limit(bytes_needed, vmem_cap):
    return int(min(int(0.9 * vmem_cap), max(bytes_needed, 8 * 2**20)))


def _resident_plan(C, HW, itemsize):
    """(chunk, estimated VMEM footprint) for the whole-sample resident path."""
    # fp32 chunk temporaries kept around ~2 MiB.
    chunk_target = max(128, (2 * 2**20) // max(1, C * 4))
    chunk = _largest_aligned_divisor(HW, 128, chunk_target) or HW
    blk = C * HW * itemsize
    # double-buffered input + output blocks, fp32 chunk temps, small params.
    footprint = 4 * blk + 6 * C * chunk * 4 + (2 << 20)
    return chunk, footprint


# ---------------------------------------------------------------------------
# Path A: whole-sample-resident, single-pass fused kernel (chunked scans).
# ---------------------------------------------------------------------------
def _adailn_fused_kernel(x_ref, gamma_ref, beta_ref, rho_ref, out_ref, *, eps, chunk):
    # x_ref: (C, HW) for one batch element (leading batch dim squeezed).
    C, HW = x_ref.shape
    n_chunks = HW // chunk

    # Pass 1 over the block: per-channel sum / sum-of-squares, chunked over HW
    # so we never materialize the whole block in fp32.
    def stat_body(i, carry):
        acc_s, acc_ss = carry
        off = pl.multiple_of(i * chunk, 128)
        xc = x_ref[:, pl.ds(off, chunk)].astype(jnp.float32)
        return (acc_s + jnp.sum(xc, axis=1, keepdims=True),
                acc_ss + jnp.sum(xc * xc, axis=1, keepdims=True))

    zeros = jnp.zeros((C, 1), jnp.float32)
    sum_c, sumsq_c = lax.fori_loop(0, n_chunks, stat_body, (zeros, zeros))

    # Instance-norm stats (per channel), unbiased variance (ddof=1).
    hw = float(HW)
    in_mean = sum_c * (1.0 / hw)
    in_var = (sumsq_c - hw * in_mean * in_mean) * (1.0 / (hw - 1.0))
    inv_in = lax.rsqrt(in_var + eps)                       # (C, 1)

    # Layer-norm stats derived from the per-channel accumulators.
    n = float(C * HW)
    ln_sum = jnp.sum(sum_c, keepdims=True)                 # (1, 1)
    ln_sumsq = jnp.sum(sumsq_c, keepdims=True)             # (1, 1)
    ln_mean = ln_sum * (1.0 / n)
    ln_var = (ln_sumsq - n * ln_mean * ln_mean) * (1.0 / (n - 1.0))
    inv_ln = lax.rsqrt(ln_var + eps)                       # (1, 1)

    rho = rho_ref[...].astype(jnp.float32)                 # (C, 1)
    gamma = gamma_ref[...].astype(jnp.float32)             # (C, 1)
    beta = beta_ref[...].astype(jnp.float32)               # (C, 1)

    a = rho * inv_in
    b = (1.0 - rho) * inv_ln
    s = gamma * (a + b)                                    # (C, 1)
    t = beta - gamma * (a * in_mean + b * ln_mean)         # (C, 1)

    # Pass 2: out = x * s + t, chunked, reading straight from the input block.
    def apply_body(i, carry):
        off = pl.multiple_of(i * chunk, 128)
        xc = x_ref[:, pl.ds(off, chunk)].astype(jnp.float32)
        out_ref[:, pl.ds(off, chunk)] = (xc * s + t).astype(out_ref.dtype)
        return carry

    lax.fori_loop(0, n_chunks, apply_body, 0)


def _adailn_resident(x3, gamma3, beta3, rho3, eps, vmem_cap, chunk, footprint):
    B, C, HW = x3.shape
    kernel = functools.partial(_adailn_fused_kernel, eps=eps, chunk=chunk)
    return pl.pallas_call(
        kernel,
        out_shape=jax.ShapeDtypeStruct((B, C, HW), x3.dtype),
        grid=(B,),
        in_specs=[
            pl.BlockSpec((None, C, HW), lambda b: (b, 0, 0)),   # x
            pl.BlockSpec((None, C, 1), lambda b: (b, 0, 0)),    # gamma
            pl.BlockSpec((None, C, 1), lambda b: (b, 0, 0)),    # beta
            pl.BlockSpec((None, C, 1), lambda b: (0, 0, 0)),    # rho (shared)
        ],
        out_specs=pl.BlockSpec((None, C, HW), lambda b: (b, 0, 0)),
        compiler_params=pltpu.CompilerParams(
            dimension_semantics=("parallel",),
            vmem_limit_bytes=_vmem_limit(footprint, vmem_cap),
        ),
    )(x3, gamma3, beta3, rho3)


# ---------------------------------------------------------------------------
# Path B: streamed two-pass path for large feature maps.
# ---------------------------------------------------------------------------
def _stats_finalize_kernel(x_ref, gamma_ref, beta_ref, rho_ref, s_ref, t_ref,
                           sum_sc, sumsq_sc, *, eps, hw_true):
    # Grid: (B, n_hw); HW is the (last, "arbitrary") reduction axis.
    h = pl.program_id(1)

    @pl.when(h == 0)
    def _():
        sum_sc[...] = jnp.zeros_like(sum_sc)
        sumsq_sc[...] = jnp.zeros_like(sumsq_sc)

    xf = x_ref[...].astype(jnp.float32)                    # (C, hw_tile)
    sum_sc[...] += jnp.sum(xf, axis=1, keepdims=True)
    sumsq_sc[...] += jnp.sum(xf * xf, axis=1, keepdims=True)

    # Finalize per-channel scale/shift in the last HW step (no host-side math,
    # no extra dispatch). Zero-padded HW lanes contribute nothing to sum/sumsq,
    # so the true HW count is used in the formulas.
    @pl.when(h == pl.num_programs(1) - 1)
    def _():
        C = sum_sc.shape[0]
        sum_c = sum_sc[...]
        sumsq_c = sumsq_sc[...]
        hw = float(hw_true)
        in_mean = sum_c * (1.0 / hw)
        in_var = (sumsq_c - hw * in_mean * in_mean) * (1.0 / (hw - 1.0))
        inv_in = lax.rsqrt(in_var + eps)                   # (C, 1)

        n = float(C * hw_true)
        ln_sum = jnp.sum(sum_c, keepdims=True)             # (1, 1)
        ln_sumsq = jnp.sum(sumsq_c, keepdims=True)
        ln_mean = ln_sum * (1.0 / n)
        ln_var = (ln_sumsq - n * ln_mean * ln_mean) * (1.0 / (n - 1.0))
        inv_ln = lax.rsqrt(ln_var + eps)                   # (1, 1)

        rho = rho_ref[...].astype(jnp.float32)
        gamma = gamma_ref[...].astype(jnp.float32)
        beta = beta_ref[...].astype(jnp.float32)
        a = rho * inv_in
        b = (1.0 - rho) * inv_ln
        s_ref[...] = gamma * (a + b)
        t_ref[...] = beta - gamma * (a * in_mean + b * ln_mean)


def _apply_kernel(x_ref, s_ref, t_ref, out_ref):
    xf = x_ref[...].astype(jnp.float32)                    # (c_tile, hw_tile)
    out_ref[...] = (xf * s_ref[...] + t_ref[...]).astype(out_ref.dtype)


def _adailn_tiled(x3, gamma3, beta3, rho3, eps, vmem_cap, hw_tile=None, c_tile=None):
    B, C, HW = x3.shape
    itemsize = x3.dtype.itemsize
    f32 = jnp.float32

    # Zero-pad HW to a multiple of 128 so lane-aligned tiles always exist.
    HW_pad = max(128, ((HW + 127) // 128) * 128)
    x3p = x3 if HW_pad == HW else jnp.pad(x3, ((0, 0), (0, 0), (0, HW_pad - HW)))

    # Generation-aware per-block input-byte target.
    blk_target = 3 * 2**20 if vmem_cap <= 80 * 2**20 else 4 * 2**20

    def pick_hw_tile(row_bytes):
        target = max(128, blk_target // max(1, row_bytes))
        return _largest_aligned_divisor(HW_pad, 128, target) or HW_pad

    user_hw_ok = (hw_tile is not None and hw_tile > 0 and HW_pad % hw_tile == 0
                  and (hw_tile % 128 == 0 or hw_tile == HW_pad))

    # ---- Pass 1: streamed per-channel sum/sumsq + s/t finalize (full C). ----
    hw_tile_s = hw_tile if user_hw_ok else pick_hw_tile(C * itemsize)
    n_hw_s = HW_pad // hw_tile_s
    stats_need = 2 * C * hw_tile_s * itemsize + 3 * C * hw_tile_s * 4 + (2 << 20)

    s, t = pl.pallas_call(
        functools.partial(_stats_finalize_kernel, eps=eps, hw_true=HW),
        out_shape=(jax.ShapeDtypeStruct((B, C, 1), f32),
                   jax.ShapeDtypeStruct((B, C, 1), f32)),
        grid=(B, n_hw_s),
        in_specs=[
            pl.BlockSpec((None, C, hw_tile_s), lambda b, h: (b, 0, h)),
            pl.BlockSpec((None, C, 1), lambda b, h: (b, 0, 0)),
            pl.BlockSpec((None, C, 1), lambda b, h: (b, 0, 0)),
            pl.BlockSpec((None, C, 1), lambda b, h: (0, 0, 0)),
        ],
        out_specs=(pl.BlockSpec((None, C, 1), lambda b, h: (b, 0, 0)),
                   pl.BlockSpec((None, C, 1), lambda b, h: (b, 0, 0))),
        scratch_shapes=[pltpu.VMEM((C, 1), f32), pltpu.VMEM((C, 1), f32)],
        compiler_params=pltpu.CompilerParams(
            dimension_semantics=("parallel", "arbitrary"),
            vmem_limit_bytes=_vmem_limit(stats_need, vmem_cap),
        ),
    )(x3p, gamma3, beta3, rho3)

    # ---- Pass 2: out = x*s + t; all grid axes parallel (megacore-friendly). ----
    sub = {1: 32, 2: 16, 4: 8}.get(itemsize, 8)            # sublane packing
    if (c_tile is None or c_tile <= 0 or C % c_tile
            or (c_tile != C and c_tile % sub)):
        c_tile = C                                         # full C unless overridden
    n_c = C // c_tile

    hw_tile_a = hw_tile if user_hw_ok else pick_hw_tile(c_tile * itemsize)
    n_hw_a = HW_pad // hw_tile_a
    apply_need = (4 * c_tile * hw_tile_a * itemsize        # 2x in + 2x out buffers
                  + 2 * c_tile * hw_tile_a * 4 + (2 << 20))

    out3p = pl.pallas_call(
        _apply_kernel,
        out_shape=jax.ShapeDtypeStruct((B, C, HW_pad), x3.dtype),
        grid=(B, n_c, n_hw_a),
        in_specs=[
            pl.BlockSpec((None, c_tile, hw_tile_a), lambda b, c, h: (b, c, h)),
            pl.BlockSpec((None, c_tile, 1), lambda b, c, h: (b, c, 0)),
            pl.BlockSpec((None, c_tile, 1), lambda b, c, h: (b, c, 0)),
        ],
        out_specs=pl.BlockSpec((None, c_tile, hw_tile_a), lambda b, c, h: (b, c, h)),
        compiler_params=pltpu.CompilerParams(
            dimension_semantics=("parallel", "parallel", "parallel"),
            vmem_limit_bytes=_vmem_limit(apply_need, vmem_cap),
        ),
    )(x3p, s, t)

    return out3p[:, :, :HW] if HW_pad != HW else out3p


# ---------------------------------------------------------------------------
# Public wrapper
# ---------------------------------------------------------------------------
def adailn(x, gamma, beta, rho, eps=1e-5, *, max_resident_bytes=None,
           hw_tile=None, c_tile=None):
    """adaILN forward. x: (B, C, H, W), gamma/beta: (B, C), rho: (1, C, 1, 1)."""
    B, C, H, W = x.shape
    HW = H * W

    x3 = x.reshape(B, C, HW)
    gamma3 = gamma.reshape(B, C, 1)
    beta3 = beta.reshape(B, C, 1)
    rho3 = rho.reshape(1, C, 1)

    vmem_cap, n_cores = _tpu_vmem_and_cores()
    if max_resident_bytes is None:
        # ~50% of VMEM on 128 MiB parts (v5e/v6e), ~30% on v7x (64 MiB/TC).
        frac = 0.3 if vmem_cap <= 80 * 2**20 else 0.5
        max_resident_bytes = int(frac * vmem_cap)

    chunk, footprint = _resident_plan(C, HW, x3.dtype.itemsize)
    use_resident = (hw_tile is None and c_tile is None
                    and footprint <= max_resident_bytes
                    and footprint <= int(0.9 * vmem_cap)
                    and B >= n_cores)                      # keep both v7x TCs busy
    if use_resident:
        out3 = _adailn_resident(x3, gamma3, beta3, rho3, eps, vmem_cap,
                                chunk, footprint)
    else:
        out3 = _adailn_tiled(x3, gamma3, beta3, rho3, eps, vmem_cap,
                             hw_tile=hw_tile, c_tile=c_tile)
    return out3.reshape(B, C, H, W)


def adailn_reference(x, gamma, beta, rho, eps=1e-5):
    """Pure-JAX reference mirroring the PyTorch forward (unbiased variance)."""
    x = x.astype(jnp.float32)
    in_mean = jnp.mean(x, axis=(2, 3), keepdims=True)
    in_var = jnp.var(x, axis=(2, 3), keepdims=True, ddof=1)
    out_in = (x - in_mean) / jnp.sqrt(in_var + eps)
    ln_mean = jnp.mean(x, axis=(1, 2, 3), keepdims=True)
    ln_var = jnp.var(x, axis=(1, 2, 3), keepdims=True, ddof=1)
    out_ln = (x - ln_mean) / jnp.sqrt(ln_var + eps)
    out = rho * out_in + (1.0 - rho) * out_ln
    return out * gamma[:, :, None, None] + beta[:, :, None, None]


if __name__ == "__main__":
    B, C, H, W = 2, 4, 16, 16
    key = jax.random.PRNGKey(0)
    kx, kg, kb = jax.random.split(key, 3)

    x = jax.random.normal(kx, (B, C, H, W), dtype=jnp.float32)
    gamma = jax.random.normal(kg, (B, C), dtype=jnp.float32)
    beta = jax.random.normal(kb, (B, C), dtype=jnp.float32)
    rho = jnp.full((1, C, 1, 1), 0.9, dtype=jnp.float32)   # filled 0.9 as in __init__

    ref = adailn_reference(x, gamma, beta, rho)

    # Path A: whole-sample-resident fused single-pass kernel (chunked scans).
    out = jax.block_until_ready(adailn(x, gamma, beta, rho))
    assert out.shape == (B, C, H, W)
    assert jnp.allclose(out, ref, atol=2e-4, rtol=2e-4), (
        f"resident path: max abs diff {jnp.max(jnp.abs(out - ref))}"
    )

    # Path B: forced streamed two-pass path with multiple HW tiles.
    out_t = jax.block_until_ready(
        adailn(x, gamma, beta, rho, max_resident_bytes=0, hw_tile=128)
    )
    assert jnp.allclose(out_t, ref, atol=2e-4, rtol=2e-4), (
        f"tiled path: max abs diff {jnp.max(jnp.abs(out_t - ref))}"
    )

    # Path B with a non-128-multiple spatial extent (exercises zero padding).
    x2 = jax.random.normal(kx, (B, C, 15, 15), dtype=jnp.float32)
    ref2 = adailn_reference(x2, gamma, beta, rho)
    out2 = jax.block_until_ready(adailn(x2, gamma, beta, rho, max_resident_bytes=0))
    assert jnp.allclose(out2, ref2, atol=2e-4, rtol=2e-4), (
        f"padded tiled path: max abs diff {jnp.max(jnp.abs(out2 - ref2))}"
    )

    print("KERNEL_OK")
</pallas_src>

<mosaic_0001>
module attributes {stable_mosaic.version = 11 : i64} {
  func.func @_adailn_fused_kernel(%arg0: i32, %arg1: memref<1x4x256xf32, #tpu.memory_space<vmem>>, %arg2: memref<1x4x1xf32, #tpu.memory_space<vmem>>, %arg3: memref<1x4x1xf32, #tpu.memory_space<vmem>>, %arg4: memref<1x4x1xf32, #tpu.memory_space<vmem>>, %arg5: memref<1x4x256xf32, #tpu.memory_space<vmem>>) attributes {dimension_semantics = [#tpu.dimension_semantics<parallel>], iteration_bounds = array<i64: 2>, scalar_prefetch = 0 : i64, scratch_operands = 0 : i64, tpu.core_type = #tpu.core_type<tc>, window_params = [{transform_indices = @transform_0, window_bounds = array<i64: 1, 4, 256>}, {transform_indices = @transform_1, window_bounds = array<i64: 1, 4, 1>}, {transform_indices = @transform_2, window_bounds = array<i64: 1, 4, 1>}, {pipeline_mode = #tpu.pipeline_mode<synchronous>, transform_indices = @transform_3, window_bounds = array<i64: 1, 4, 1>}, {transform_indices = @transform_4, window_bounds = array<i64: 1, 4, 256>}]} {
    %cst = arith.constant 0.000000e+00 : f32
    %0 = vector.broadcast %cst : f32 to vector<4x1xf32>
    %c0_i32 = arith.constant 0 : i32
    %c256_i32 = arith.constant 256 : i32
    %1 = arith.muli %c0_i32, %c256_i32 : i32
    %2 = tpu.assume_multiple %1, 128 : i32
    %c0 = arith.constant 0 : index
    %c0_0 = arith.constant 0 : index
    %3 = arith.index_cast %2 : i32 to index
    %4 = vector.load %arg1[%c0, %c0_0, %3] : memref<1x4x256xf32, #tpu.memory_space<vmem>>, vector<1x4x256xf32>
    %5 = vector.shape_cast %4 : vector<1x4x256xf32> to vector<4x256xf32>
    %cst_1 = arith.constant dense<0.000000e+00> : vector<4xf32>
    %6 = vector.multi_reduction <add>, %5, %cst_1 [1] : vector<4x256xf32> to vector<4xf32>
    %7 = vector.shape_cast %6 : vector<4xf32> to vector<4x1xf32>
    %8 = arith.addf %0, %7 : vector<4x1xf32>
    %9 = arith.mulf %5, %5 : vector<4x256xf32>
    %cst_2 = arith.constant dense<0.000000e+00> : vector<4xf32>
    %10 = vector.multi_reduction <add>, %9, %cst_2 [1] : vector<4x256xf32> to vector<4xf32>
    %11 = vector.shape_cast %10 : vector<4xf32> to vector<4x1xf32>
    %12 = arith.addf %0, %11 : vector<4x1xf32>
    %c1_i32 = arith.constant 1 : i32
    %cst_3 = arith.constant 3.906250e-03 : f32
    %13 = vector.broadcast %cst_3 : f32 to vector<4x1xf32>
    %14 = arith.mulf %8, %13 : vector<4x1xf32>
    %cst_4 = arith.constant 2.560000e+02 : f32
    %15 = vector.broadcast %cst_4 : f32 to vector<4x1xf32>
    %16 = arith.mulf %15, %14 : vector<4x1xf32>
    %17 = arith.mulf %16, %14 : vector<4x1xf32>
    %18 = arith.subf %12, %17 : vector<4x1xf32>
    %cst_5 = arith.constant 0.00392156886 : f32
    %19 = vector.broadcast %cst_5 : f32 to vector<4x1xf32>
    %20 = arith.mulf %18, %19 : vector<4x1xf32>
    %cst_6 = arith.constant 9.99999974E-6 : f32
    %21 = vector.broadcast %cst_6 : f32 to vector<4x1xf32>
    %22 = arith.addf %20, %21 : vector<4x1xf32>
    %23 = math.rsqrt %22 : vector<4x1xf32>
    %24 = vector.shape_cast %8 : vector<4x1xf32> to vector<1x4x1xf32>
    %cst_7 = arith.constant dense<0.000000e+00> : vector<1xf32>
    %25 = vector.multi_reduction <add>, %24, %cst_7 [1, 2] : vector<1x4x1xf32> to vector<1xf32>
    %26 = vector.shape_cast %25 : vector<1xf32> to vector<1x1x1xf32>
    %27 = vector.extract %26[0, 0, 0] : f32 from vector<1x1x1xf32>
    %28 = vector.broadcast %27 : f32 to vector<1x1xf32>
    %29 = vector.shape_cast %12 : vector<4x1xf32> to vector<1x4x1xf32>
    %cst_8 = arith.constant dense<0.000000e+00> : vector<1xf32>
    %30 = vector.multi_reduction <add>, %29, %cst_8 [1, 2] : vector<1x4x1xf32> to vector<1xf32>
    %31 = vector.shape_cast %30 : vector<1xf32> to vector<1x1x1xf32>
    %32 = vector.extract %31[0, 0, 0] : f32 from vector<1x1x1xf32>
    %33 = vector.broadcast %32 : f32 to vector<1x1xf32>
    %cst_9 = arith.constant 9.765625E-4 : f32
    %34 = vector.broadcast %cst_9 : f32 to vector<1x1xf32>
    %35 = arith.mulf %28, %34 : vector<1x1xf32>
    %cst_10 = arith.constant 1.024000e+03 : f32
    %36 = vector.broadcast %cst_10 : f32 to vector<1x1xf32>
    %37 = arith.mulf %36, %35 : vector<1x1xf32>
    %38 = arith.mulf %37, %35 : vector<1x1xf32>
    %39 = arith.subf %33, %38 : vector<1x1xf32>
    %cst_11 = arith.constant 9.77517105E-4 : f32
    %40 = vector.broadcast %cst_11 : f32 to vector<1x1xf32>
    %41 = arith.mulf %39, %40 : vector<1x1xf32>
    %cst_12 = arith.constant 9.99999974E-6 : f32
    %42 = vector.broadcast %cst_12 : f32 to vector<1x1xf32>
    %43 = arith.addf %41, %42 : vector<1x1xf32>
    %44 = math.rsqrt %43 : vector<1x1xf32>
    %c0_13 = arith.constant 0 : index
    %c0_14 = arith.constant 0 : index
    %c0_15 = arith.constant 0 : index
    %45 = vector.load %arg4[%c0_13, %c0_14, %c0_15] : memref<1x4x1xf32, #tpu.memory_space<vmem>>, vector<1x4x1xf32>
    %46 = vector.shape_cast %45 : vector<1x4x1xf32> to vector<4x1xf32>
    %c0_16 = arith.constant 0 : index
    %c0_17 = arith.constant 0 : index
    %c0_18 = arith.constant 0 : index
    %47 = vector.load %arg2[%c0_16, %c0_17, %c0_18] : memref<1x4x1xf32, #tpu.memory_space<vmem>>, vector<1x4x1xf32>
    %48 = vector.shape_cast %47 : vector<1x4x1xf32> to vector<4x1xf32>
    %c0_19 = arith.constant 0 : index
    %c0_20 = arith.constant 0 : index
    %c0_21 = arith.constant 0 : index
    %49 = vector.load %arg3[%c0_19, %c0_20, %c0_21] : memref<1x4x1xf32, #tpu.memory_space<vmem>>, vector<1x4x1xf32>
    %50 = vector.shape_cast %49 : vector<1x4x1xf32> to vector<4x1xf32>
    %51 = arith.mulf %46, %23 : vector<4x1xf32>
    %cst_22 = arith.constant 1.000000e+00 : f32
    %52 = vector.broadcast %cst_22 : f32 to vector<4x1xf32>
    %53 = arith.subf %52, %46 : vector<4x1xf32>
    %54 = vector.broadcast %44 : vector<1x1xf32> to vector<4x1xf32>
    %55 = arith.mulf %53, %54 : vector<4x1xf32>
    %56 = arith.addf %51, %55 : vector<4x1xf32>
    %57 = arith.mulf %48, %56 : vector<4x1xf32>
    %58 = arith.mulf %51, %14 : vector<4x1xf32>
    %59 = vector.broadcast %35 : vector<1x1xf32> to vector<4x1xf32>
    %60 = arith.mulf %55, %59 : vector<4x1xf32>
    %61 = arith.addf %58, %60 : vector<4x1xf32>
    %62 = arith.mulf %48, %61 : vector<4x1xf32>
    %63 = arith.subf %50, %62 : vector<4x1xf32>
    %c0_i32_23 = arith.constant 0 : i32
    %c256_i32_24 = arith.constant 256 : i32
    %64 = arith.muli %c0_i32_23, %c256_i32_24 : i32
    %65 = tpu.assume_multiple %64, 128 : i32
    %c0_25 = arith.constant 0 : index
    %c0_26 = arith.constant 0 : index
    %66 = arith.index_cast %65 : i32 to index
    %67 = vector.load %arg1[%c0_25, %c0_26, %66] : memref<1x4x256xf32, #tpu.memory_space<vmem>>, vector<1x4x256xf32>
    %68 = vector.shape_cast %67 : vector<1x4x256xf32> to vector<4x256xf32>
    %69 = vector.broadcast %57 : vector<4x1xf32> to vector<4x256xf32>
    %70 = arith.mulf %68, %69 : vector<4x256xf32>
    %71 = vector.broadcast %63 : vector<4x1xf32> to vector<4x256xf32>
    %72 = arith.addf %70, %71 : vector<4x256xf32>
    %c0_27 = arith.constant 0 : index
    %c0_28 = arith.constant 0 : index
    %73 = arith.index_cast %65 : i32 to index
    %74 = vector.load %arg5[%c0_27, %c0_28, %73] : memref<1x4x256xf32, #tpu.memory_space<vmem>>, vector<1x4x256xf32>
    %75 = vector.shape_cast %74 : vector<1x4x256xf32> to vector<4x256xf32>
    %76 = vector.shape_cast %72 : vector<4x256xf32> to vector<1x4x256xf32>
    tpu.vector_store %arg5[%c0_27, %c0_28, %73], %76 {strides = array<i32>} : memref<1x4x256xf32, #tpu.memory_space<vmem>>, vector<1x4x256xf32>,
    %c1_i32_29 = arith.constant 1 : i32
    return
  }
  func.func @transform_0(%arg0: i32) -> (i32, i32, i32) {
    %c0_i32 = arith.constant 0 : i32
    %c0_i32_0 = arith.constant 0 : i32
    %c0_i32_1 = arith.constant 0 : i32
    return %arg0, %c0_i32, %c0_i32_0 : i32, i32, i32
  }
  func.func @transform_1(%arg0: i32) -> (i32, i32, i32) {
    %c0_i32 = arith.constant 0 : i32
    %c0_i32_0 = arith.constant 0 : i32
    %c0_i32_1 = arith.constant 0 : i32
    return %arg0, %c0_i32, %c0_i32_0 : i32, i32, i32
  }
  func.func @transform_2(%arg0: i32) -> (i32, i32, i32) {
    %c0_i32 = arith.constant 0 : i32
    %c0_i32_0 = arith.constant 0 : i32
    %c0_i32_1 = arith.constant 0 : i32
    return %arg0, %c0_i32, %c0_i32_0 : i32, i32, i32
  }
  func.func @transform_3(%arg0: i32) -> (i32, i32, i32) {
    %c0_i32 = arith.constant 0 : i32
    %c0_i32_0 = arith.constant 0 : i32
    %c0_i32_1 = arith.constant 0 : i32
    %c0_i32_2 = arith.constant 0 : i32
    return %c0_i32, %c0_i32_0, %c0_i32_1 : i32, i32, i32
  }
  func.func @transform_4(%arg0: i32) -> (i32, i32, i32) {
    %c0_i32 = arith.constant 0 : i32
    %c0_i32_0 = arith.constant 0 : i32
    %c0_i32_1 = arith.constant 0 : i32
    return %arg0, %c0_i32, %c0_i32_0 : i32, i32, i32
  }
}

</mosaic_0001>

<llo_original>
// kernel: tpu_custom_call.1
$region0: #{tpu_custom_call.1}
  #allocation0 [shape = 'u32[]', space=smem, size = 0x4, offset = 0x4, fixed_abs, tag = 'smem constant byte address 0x4 - core index']
  #allocation1 [shape = 'u32[144,128]{1,0:T(1,128)}', space=vmem, size = 0x12000, scoped, tag = 'internal scratch']
  %s0 = inlined_call_operand.vmem [shape: f32[2,4,256], index: 0, kind: input, shape index: {}]
  %s1 = inlined_call_operand.vmem [shape: f32[2,4,1], index: 1, kind: input, shape index: {}]
  %s2 = inlined_call_operand.vmem [shape: f32[2,4,1], index: 2, kind: input, shape index: {}]
  %s3 = inlined_call_operand.vmem [shape: f32[1,4,1], index: 3, kind: input, shape index: {}]
  %s4 = inlined_call_operand.hbm [shape: f32[2,4,256], index: 4, kind: output, shape index: {}]
  %s5 = sld [smem:[#allocation0]]
  $region49: #{tpu_custom_call.1} parent=0
    _
  %s7 = ssub.s32 1, %s5
  %s8 = scalar_select 0, %s7, %s5
  $region1: #{tpu_custom_call.1} parent=0
    #allocation2 [shape = 'u8[8192]{0}', space=vmem, size = 0x2000, scoped, tag = 'output window, operand 0']
    #allocation3 [shape = 's32[2]{0}', space=sflag, size = 0x8, scoped, tag = 'scoped memory for tpu_custom_call.1']
    %9 = vsyncpa [#allocation3], 0
    %s10 = scalar_lea.sflag [#allocation3], 1
    %11 = vsyncpa %s10, 0
    loop: start=0, step=1, limit=4
    $region2: #{tpu_custom_call.1} parent=1 // loop_pre_header
      _
    $region3: #{tpu_custom_call.1} parent=1 // loop_header
      %s13 = sphi 0, %s17
      %p14 = scmp.ge.s32.totalorder %s13, 4
      %s23 = sphi 0, %s25
      %s26 = sphi 0, %s23
      %s27 = sphi 0, %s26
      %s43 = sphi 0, %s27
      %s49 = sphi 0, %s51
      %s52 = sphi 0, %s49
      %s53 = sphi 0, %s52
      %s69 = sphi 0, %s53
      %s75 = sphi 0, %s77
      %s78 = sphi 0, %s75
      %s79 = sphi 0, %s78
      %s95 = sphi 0, %s79
      %s99 = sphi 0, %s99
      %s101 = sphi 0, %s99
      %s102 = sphi 0, %s101
      %s116 = sphi 0, %s102
      %s122 = sphi 0, %s124
      %s125 = sphi 0, %s122
      %s126 = sphi 0, %s125
      %s142 = sphi 0, %s126
    $region4: #{tpu_custom_call.1} parent=1 // loop_header_branch
      %16 = sbr.rel (%p14) target = $region8
    $region5: #{tpu_custom_call.1} parent=1 // loop_body
      %s18 = ssub.s32 %s13, 1
      %s19 = ssub.s32 %s13, 2
      %s20 = sadd.s32 %s13, 1
      %s21 = ssub.s32 %s13, %s20
      %p22 = scmp.eq.s32.totalorder %s21, 0
      %s24 = sadd.s32 %s23, 1
      %s25 = scalar_select %p22, %s23, %s24
      %p28 = pneg %p22
      %p29 = scmp.eq.s32.totalorder %s13, 1
      %p30 = por %p28, %p29
      %p31 = scmp.ne.s32.totalorder %s23, %s26
      %p32 = scmp.eq.s32.totalorder %s13, 0
      %p33 = por %p31, %p32
      %p34 = scmp.ne.s32.totalorder %s23, %s26
      %p35 = scmp.eq.s32.totalorder %s18, 1
      %p36 = por %p34, %p35
      %p37 = scmp.ne.s32.totalorder %s26, %s27
      %p38 = scmp.eq.s32.totalorder %s18, 0
      %p39 = por %p37, %p38
      %p40 = scmp.ne.s32.totalorder %s26, %s27
      %p41 = scmp.eq.s32.totalorder %s19, 1
      %p42 = por %p40, %p41
      %p44 = scmp.ne.s32.totalorder %s27, %s43
      %p45 = scmp.eq.s32.totalorder %s19, 0
      %p46 = por %p44, %p45
      %s47 = ssub.s32 %s13, %s20
      %p48 = scmp.eq.s32.totalorder %s47, 0
      %s50 = sadd.s32 %s49, 1
      %s51 = scalar_select %p48, %s49, %s50
      %p54 = pneg %p48
      %p55 = scmp.eq.s32.totalorder %s13, 1
      %p56 = por %p54, %p55
      %p57 = scmp.ne.s32.totalorder %s49, %s52
      %p58 = scmp.eq.s32.totalorder %s13, 0
      %p59 = por %p57, %p58
      %p60 = scmp.ne.s32.totalorder %s49, %s52
      %p61 = scmp.eq.s32.totalorder %s18, 1
      %p62 = por %p60, %p61
      %p63 = scmp.ne.s32.totalorder %s52, %s53
      %p64 = scmp.eq.s32.totalorder %s18, 0
      %p65 = por %p63, %p64
      %p66 = scmp.ne.s32.totalorder %s52, %s53
      %p67 = scmp.eq.s32.totalorder %s19, 1
      %p68 = por %p66, %p67
      %p70 = scmp.ne.s32.totalorder %s53, %s69
      %p71 = scmp.eq.s32.totalorder %s19, 0
      %p72 = por %p70, %p71
      %s73 = ssub.s32 %s13, %s20
      %p74 = scmp.eq.s32.totalorder %s73, 0
      %s76 = sadd.s32 %s75, 1
      %s77 = scalar_select %p74, %s75, %s76
      %p80 = pneg %p74
      %p81 = scmp.eq.s32.totalorder %s13, 1
      %p82 = por %p80, %p81
      %p83 = scmp.ne.s32.totalorder %s75, %s78
      %p84 = scmp.eq.s32.totalorder %s13, 0
      %p85 = por %p83, %p84
      %p86 = scmp.ne.s32.totalorder %s75, %s78
      %p87 = scmp.eq.s32.totalorder %s18, 1
      %p88 = por %p86, %p87
      %p89 = scmp.ne.s32.totalorder %s78, %s79
      %p90 = scmp.eq.s32.totalorder %s18, 0
      %p91 = por %p89, %p90
      %p92 = scmp.ne.s32.totalorder %s78, %s79
      %p93 = scmp.eq.s32.totalorder %s19, 1
      %p94 = por %p92, %p93
      %p96 = scmp.ne.s32.totalorder %s79, %s95
      %p97 = scmp.eq.s32.totalorder %s19, 0
      %p98 = por %p96, %p97
      %s100 = sadd.s32 %s99, 1
      %p103 = scmp.eq.s32.totalorder %s13, 1
      %p104 = scmp.ne.s32.totalorder %s99, %s101
      %p105 = scmp.eq.s32.totalorder %s13, 0
      %p106 = por %p104, %p105
      %p107 = scmp.ne.s32.totalorder %s99, %s101
      %p108 = scmp.eq.s32.totalorder %s18, 1
      %p109 = por %p107, %p108
      %p110 = scmp.ne.s32.totalorder %s101, %s102
      %p111 = scmp.eq.s32.totalorder %s18, 0
      %p112 = por %p110, %p111
      %p113 = scmp.ne.s32.totalorder %s101, %s102
      %p114 = scmp.eq.s32.totalorder %s19, 1
      %p115 = por %p113, %p114
      %p117 = scmp.ne.s32.totalorder %s102, %s116
      %p118 = scmp.eq.s32.totalorder %s19, 0
      %p119 = por %p117, %p118
      %s120 = ssub.s32 %s13, %s20
      %p121 = scmp.eq.s32.totalorder %s120, 0
      %s123 = sadd.s32 %s122, 1
      %s124 = scalar_select %p121, %s122, %s123
      %p127 = pneg %p121
      %p128 = scmp.eq.s32.totalorder %s13, 1
      %p129 = por %p127, %p128
      %p130 = scmp.ne.s32.totalorder %s122, %s125
      %p131 = scmp.eq.s32.totalorder %s13, 0
      %p132 = por %p130, %p131
      %p133 = scmp.ne.s32.totalorder %s122, %s125
      %p134 = scmp.eq.s32.totalorder %s18, 1
      %p135 = por %p133, %p134
      %p136 = scmp.ne.s32.totalorder %s125, %s126
      %p137 = scmp.eq.s32.totalorder %s18, 0
      %p138 = por %p136, %p137
      %p139 = scmp.ne.s32.totalorder %s125, %s126
      %p140 = scmp.eq.s32.totalorder %s19, 1
      %p141 = por %p139, %p140
      %p143 = scmp.ne.s32.totalorder %s126, %s142
      %p144 = scmp.eq.s32.totalorder %s19, 0
      %p145 = por %p143, %p144
      %p146 = scmp.le.s32.totalorder 1, %s13
      %p147 = scmp.lt.s32.totalorder %s13, 3
      %p148 = pnand %p146, %p147
      %p149 = pneg %p148
      // Predicated region
      $region9: #{tpu_custom_call.1} parent=5 // pred_check
        _
      $region10: #{tpu_custom_call.1} parent=5 // pred_check_branch
        %151 = sbr.rel (%p148) target = $region12
      $region11: #{tpu_custom_call.1} parent=5 // pred_region
        %s152 = ssub.s32 %s13, 1
        // Predicated region
        $region13: #{tpu_custom_call.1} parent=11 // pred_check
          %p153 = pneg %p112
        $region14: #{tpu_custom_call.1} parent=11 // pred_check_branch
          %155 = sbr.rel (%p153) target = $region16
        $region15: #{tpu_custom_call.1} parent=11 // pred_region
          _
        $region16: #{tpu_custom_call.1} parent=11 // pred_fallthru
          _
      $region12: #{tpu_custom_call.1} parent=5 // pred_fallthru
        _
      %p156 = scmp.lt.s32.totalorder %s13, 2
      // Predicated region
      $region17: #{tpu_custom_call.1} parent=5 // pred_check
        %p157 = pneg %p156
      $region18: #{tpu_custom_call.1} parent=5 // pred_check_branch
        %159 = sbr.rel (%p157) target = $region20
      $region19: #{tpu_custom_call.1} parent=5 // pred_region
        // Predicated region
        $region21: #{tpu_custom_call.1} parent=19 // pred_check
          %p160 = pneg %p33
        $region22: #{tpu_custom_call.1} parent=19 // pred_check_branch
          %162 = sbr.rel (%p160) target = $region24
        $region23: #{tpu_custom_call.1} parent=19 // pred_region
          %p163 = scmp.lt.s32.totalorder %s13, 1
          %s164 = scalar_select %p163, %s13, 1
          %s165 = smul.addr %s164, 2
          %s166 = smul.addr %s165, 4
          %s167 = scalar_lea.vmem %s0, %s166
        $region24: #{tpu_custom_call.1} parent=19 // pred_fallthru
          _
        // Predicated region
        $region25: #{tpu_custom_call.1} parent=19 // pred_check
          %p168 = pneg %p59
        $region26: #{tpu_custom_call.1} parent=19 // pred_check_branch
          %170 = sbr.rel (%p168) target = $region28
        $region27: #{tpu_custom_call.1} parent=19 // pred_region
          %p171 = scmp.lt.s32.totalorder %s13, 1
          %s172 = scalar_select %p171, %s13, 1
          %s173 = smul.addr %s172, 4
          %s174 = scalar_lea.vmem %s1, %s173
        $region28: #{tpu_custom_call.1} parent=19 // pred_fallthru
          _
        // Predicated region
        $region29: #{tpu_custom_call.1} parent=19 // pred_check
          %p175 = pneg %p85
        $region30: #{tpu_custom_call.1} parent=19 // pred_check_branch
          %177 = sbr.rel (%p175) target = $region32
        $region31: #{tpu_custom_call.1} parent=19 // pred_region
          %p178 = scmp.lt.s32.totalorder %s13, 1
          %s179 = scalar_select %p178, %s13, 1
          %s180 = smul.addr %s179, 4
          %s181 = scalar_lea.vmem %s2, %s180
        $region32: #{tpu_custom_call.1} parent=19 // pred_fallthru
          _
      $region20: #{tpu_custom_call.1} parent=5 // pred_fallthru
        _
      %p182 = scmp.le.s32.totalorder 1, %s13
      %p183 = scmp.lt.s32.totalorder %s13, 3
      %p184 = pnand %p182, %p183
      %p185 = pneg %p184
      // Predicated region
      $region33: #{tpu_custom_call.1} parent=5 // pred_check
        _
      $region34: #{tpu_custom_call.1} parent=5 // pred_check_branch
        %187 = sbr.rel (%p184) target = $region36
      $region35: #{tpu_custom_call.1} parent=5 // pred_region
        %s188 = ssub.s32 %s13, 1
        %p189 = scmp.lt.s32.totalorder %s18, 1
        %s190 = scalar_select %p189, %s18, 1
        %s191 = smul.addr %s190, 2
        %s192 = smul.addr %s191, 4
        %s193 = scalar_lea.vmem %s0, %s192
        %p194 = pneg %p39
        %p195 = pneg %p36
        %p196 = scmp.lt.s32.totalorder %s18, 1
        %s197 = scalar_select %p196, %s18, 1
        %s198 = smul.addr %s197, 4
        %s199 = scalar_lea.vmem %s1, %s198
        %p200 = pneg %p65
        %p201 = pneg %p62
        %p202 = scmp.lt.s32.totalorder %s18, 1
        %s203 = scalar_select %p202, %s18, 1
        %s204 = smul.addr %s203, 4
        %s205 = scalar_lea.vmem %s2, %s204
        %p206 = pneg %p91
        %p207 = pneg %p88
        %p208 = pneg %p112
        %p209 = pneg %p109
        %p210 = pneg %p138
        %p211 = pneg %p135
        %s212 = sand.u32 %s125, 1
        %s213 = scalar_lea.sflag [#allocation3], %s212
        %s214 = sand.u32 %s125, 1
        %s215 = smul.addr %s214, 8
        %s216 = scalar_lea.vmem [#allocation2], %s215
        %p217 = scmp.lt.s32.totalorder %s18, 1
        %s218 = scalar_select %p217, %s18, 1
        %s219 = smul.addr %s218, 2
        %s220 = smul.addr %s219, 4
        %s221 = scalar_lea.vmem %s0, %s220
        %p222 = scmp.lt.s32.totalorder %s18, 1
        %s223 = scalar_select %p222, %s18, 1
        %s224 = smul.addr %s223, 4
        %s225 = scalar_lea.vmem %s1, %s224
        %p226 = scmp.lt.s32.totalorder %s18, 1
        %s227 = scalar_select %p226, %s18, 1
        %s228 = smul.addr %s227, 4
        %s229 = scalar_lea.vmem %s2, %s228
        %v230 = vld [vmem:[%s221] sm:$0xff]
        %v232 = vcombine.high %v230, %v230
        %vm234 = vcmask 1043456
        %v235 = vsel %vm234, %v230, 0.0
        %v236 = vsel %vm234, %v232, 0.0
        %v237 = vadd.f32 %v235, %v236
        %238 = vadd.xlane.f32.xlu0 %v237
        %v239 = vpop.xlane.xlu0 %238
        %v240 = vadd.f32 %v239, 0.0
        %v241 = vmul.f32 %v230, %v230
        %v243 = vcombine.high %v241, %v241
        %v245 = vsel %vm234, %v241, 0.0
        %v246 = vsel %vm234, %v243, 0.0
        %v247 = vadd.f32 %v245, %v246
        %248 = vadd.xlane.f32.xlu0 %v247
        %v249 = vpop.xlane.xlu0 %248
        %v250 = vadd.f32 %v249, 0.0
        %v251 = vmul.f32 %v240, 0.00390625
        %v252 = vmul.f32 %v251, 256.0
        %v253 = vmul.f32 %v252, %v251
        %v254 = vsub.f32 %v250, %v253
        %v255 = vmul.f32 %v254, 0.003921569
        %v256 = vadd.f32 %v255, 1e-05
        %v257 = vrsqrt.pop %v256
        %vm258 = vcmask 3072
        %v259 = vsel %vm258, %v240, 0.0
        %260 = vadd.xlane.f32.xlu0 %v259
        %v261 = vpop.xlane.xlu0 %260
        %v262 = vrot.slane %v261, 4
        %v263 = vadd.f32 %v261, %v262
        %v264 = vrot.slane %v263, 2
        %v265 = vadd.f32 %v263, %v264
        %v266 = vrot.slane %v265, 1
        %v267 = vadd.f32 %v265, %v266
        %s268 = vtos %v267
        %v269 = vstv %s268
        %v270 = vsel %vm258, %v250, 0.0
        %271 = vadd.xlane.f32.xlu0 %v270
        %v272 = vpop.xlane.xlu0 %271
        %v273 = vrot.slane %v272, 4
        %v274 = vadd.f32 %v272, %v273
        %v275 = vrot.slane %v274, 2
        %v276 = vadd.f32 %v274, %v275
        %v277 = vrot.slane %v276, 1
        %v278 = vadd.f32 %v276, %v277
        %s279 = vtos %v278
        %v280 = vstv %s279
        %v281 = vmul.f32 %v269, 0.0009765625
        %v282 = vmul.f32 %v281, 1024.0
        %v283 = vmul.f32 %v282, %v281
        %v284 = vsub.f32 %v280, %v283
        %v285 = vmul.f32 %v284, 0.0009775171
        %v286 = vadd.f32 %v285, 1e-05
        %v287 = vrsqrt.pop %v286
        %v288 = vld [vmem:[%s3] sm:$0xf]
        %v289 = vld [vmem:[%s225] sm:$0xf]
        %v290 = vld [vmem:[%s229] sm:$0xf]
        %v291 = vmul.f32 %v288, %v257
        %v292 = vsub.f32 1.0, %v288
        %v293 = vmul.f32 %v292, %v287
        %v294 = vadd.f32 %v291, %v293
        %v295 = vmul.f32 %v289, %v294
        %v296 = vmul.f32 %v291, %v251
        %v297 = vmul.f32 %v293, %v281
        %v298 = vadd.f32 %v296, %v297
        %v299 = vmul.f32 %v289, %v298
        %v300 = vsub.f32 %v290, %v299
        %302 = vset.pattern.permute.xlu0 0
        %303 = vperm.xlu0 %302, %v295
        %v304 = vpop.permute.xlu0 %303
        %v306 = vunpack.c.l.s4 839922192
        %v307 = vunpack.c.0.s8 %v306
        %v308 = vlaneseq
        %v309 = vshrl.u32 %v308, 7
        %v310 = vsub.s32 %v307, %v309
        %v311 = vrot.slane %v304, %v310
        %v313 = vmul.f32 %v230, %v311
        %315 = vset.pattern.permute.xlu0 0
        %316 = vperm.xlu0 %315, %v300
        %v317 = vpop.permute.xlu0 %316
        %v319 = vunpack.c.l.s4 839922192
        %v320 = vunpack.c.0.s8 %v319
        %v321 = vlaneseq
        %v322 = vshrl.u32 %v321, 7
        %v323 = vsub.s32 %v320, %v322
        %v324 = vrot.slane %v317, %v323
        %v326 = vadd.f32 %v313, %v324
        %327 = vst [vmem:[%s216] sm:$0xff] %v326
        %s328 = sand.u32 %s125, 1
        %s329 = scalar_lea.sflag [#allocation3], %s328
        %s330 = sand.u32 %s125, 1
        %s331 = smul.addr %s330, 8
        %s332 = scalar_lea.vmem [#allocation2], %s331
        // Predicated region
        $region37: #{tpu_custom_call.1} parent=35 // pred_check
          %p333 = pneg %p135
        $region38: #{tpu_custom_call.1} parent=35 // pred_check_branch
          %335 = sbr.rel (%p333) target = $region40
        $region39: #{tpu_custom_call.1} parent=35 // pred_region
          %s337 = ssub.s32 128, 128
          %338 = vsyncadd %s329, %s337
          %s339 = smul.addr %s18, 2
          %s340 = smul.addr %s339, 64
          %s341 = scalar_lea.hbm %s4, %s340
          %s343 = sshll.u32 %s332, 4
          %s344 = int_to_ptr.vmem [resolvable:$true] %s343
          %346 = dma.vmem_to_hbm [thread:$0]  %s344, 128, %s341, %s329
        $region40: #{tpu_custom_call.1} parent=35 // pred_fallthru
          _
      $region36: #{tpu_custom_call.1} parent=5 // pred_fallthru
        _
      %p347 = scmp.le.s32.totalorder 2, %s13
      // Predicated region
      $region41: #{tpu_custom_call.1} parent=5 // pred_check
        %p348 = pneg %p347
      $region42: #{tpu_custom_call.1} parent=5 // pred_check_branch
        %350 = sbr.rel (%p348) target = $region44
      $region43: #{tpu_custom_call.1} parent=5 // pred_region
        %s351 = ssub.s32 %s13, 2
        // Predicated region
        $region45: #{tpu_custom_call.1} parent=43 // pred_check
          %p352 = pneg %p141
        $region46: #{tpu_custom_call.1} parent=43 // pred_check_branch
          %354 = sbr.rel (%p352) target = $region48
        $region47: #{tpu_custom_call.1} parent=43 // pred_region
          %s355 = sand.u32 %s126, 1
          %s356 = scalar_lea.sflag [#allocation3], %s355
          %s357 = sand.u32 %s126, 1
          %s358 = smul.addr %s357, 8
          %s359 = scalar_lea.vmem [#allocation2], %s358
          %360 = dma.done %s356, 128
        $region48: #{tpu_custom_call.1} parent=43 // pred_fallthru
          _
      $region44: #{tpu_custom_call.1} parent=5 // pred_fallthru
        _
    $region6: #{tpu_custom_call.1} parent=1 // loop_footer
      %s17 = sadd.s32 1, %s13
    $region7: #{tpu_custom_call.1} parent=1 // loop_footer_branch
      %12 = sbr.rel target = $region3
    $region8: #{tpu_custom_call.1} parent=1 // loop_exit
      _
    %361 = vsyncpa [#allocation3], 1
    %s362 = scalar_lea.sflag [#allocation3], 1
    %363 = vsyncpa %s362, 1

</llo_original>
